<compile_context>
chip_gen: v7x
topology: tpu7x:2x2x1
jax: 0.10.0
libtpu: 0.0.40
codegen_flags: <defaults>
</compile_context>

<pallas_src>
import numpy as np
import jax
import jax.numpy as jnp
from jax.experimental import pallas as pl
from jax.experimental.pallas import tpu as pltpu

LANES = 128
SUBLANES = 8

# pl.reciprocal(..., approx=True) moves the sigmoid divide to the EUP slot, but
# its ~1e-4 relative error is marginal against the 2e-4 reference tolerance, so
# the exact divide is the default.  Same story for bf16 MXU inputs on v6e/v5e.
USE_APPROX_RECIPROCAL = False


def _sigmoid(x):
    e = jnp.exp(-x)
    if USE_APPROX_RECIPROCAL:
        return pl.reciprocal(1.0 + e, approx=True)
    return 1.0 / (1.0 + e)


# ----------------------------------------------------------------------------
# Kernel 1: fused MLPs + gram matrices + sigmoid contexts, tiled over (N, N)
# ----------------------------------------------------------------------------
def ctx_kernel(emb_r_ref, emb_c_ref, w1_ref, b1_ref, w2l_ref, b2l_ref,
               w2a_ref, b2a_ref, aa_ref, link_ref, aa_ctx_ref):
    # w1: (D, 2H) = [wl1 | wa1]; w2l: (2H, H) = [wl2 ; 0]; w2a: (2H, H) = [0 ; wa2]
    def latents(x):
        h = jnp.dot(x, w1_ref[...], preferred_element_type=jnp.float32) + b1_ref[...]
        h = jnp.maximum(h, 0.0)
        ll = jnp.dot(h, w2l_ref[...], preferred_element_type=jnp.float32) + b2l_ref[...]
        la = jnp.dot(h, w2a_ref[...], preferred_element_type=jnp.float32) + b2a_ref[...]
        return ll, la

    ll_r, la_r = latents(emb_r_ref[...])      # latents for this tile's rows
    ll_c, la_c = latents(emb_c_ref[...])      # latents for this tile's cols
    # latent @ latent.T block: contract on hidden axis, no explicit transpose.
    gram_link = jax.lax.dot_general(ll_r, ll_c, (((1,), (1,)), ((), ())),
                                    preferred_element_type=jnp.float32)
    gram_aa = jax.lax.dot_general(la_r, la_c, (((1,), (1,)), ((), ())),
                                  preferred_element_type=jnp.float32)
    link_ref[...] = _sigmoid(gram_link)
    aa_ctx_ref[...] = _sigmoid(gram_aa * aa_ref[...])


def _ctx_tile(n):
    # Biggest tile that keeps per-step VMEM well under the 16 MiB v5e scoped
    # default (512^2 f32 tile = 1 MiB; ~6.3 MiB with double-buffering).
    for t in (512, 256, 128):
        if n % t == 0:
            return t
    # TODO(synk): ragged N > 512 would need a ceil-div grid + masking; the toy
    # and any (8,128)-aligned N are covered by the full-extent fallback/tiles.
    return n


def run_contexts(emb, aa, w1, b1, w2l, b2l, w2a, b2a):
    N, D = emb.shape
    H2 = w1.shape[1]
    H = w2l.shape[1]
    tn = _ctx_tile(N)
    grid = (N // tn, N // tn)
    const = lambda i, j: (0, 0)
    return pl.pallas_call(
        ctx_kernel,
        out_shape=(jax.ShapeDtypeStruct((N, N), jnp.float32),
                   jax.ShapeDtypeStruct((N, N), jnp.float32)),
        grid=grid,
        in_specs=[
            pl.BlockSpec((tn, D), lambda i, j: (i, 0)),   # emb rows of the tile
            pl.BlockSpec((tn, D), lambda i, j: (j, 0)),   # emb cols of the tile
            pl.BlockSpec((D, H2), const),                 # fused layer-1 weight
            pl.BlockSpec((1, H2), const),
            pl.BlockSpec((H2, H), const),                 # link layer-2 (zero-padded)
            pl.BlockSpec((1, H), const),
            pl.BlockSpec((H2, H), const),                 # aa layer-2 (zero-padded)
            pl.BlockSpec((1, H), const),
            pl.BlockSpec((tn, tn), lambda i, j: (i, j)),  # aa tile
        ],
        out_specs=(pl.BlockSpec((tn, tn), lambda i, j: (i, j)),
                   pl.BlockSpec((tn, tn), lambda i, j: (i, j))),
        compiler_params=pltpu.CompilerParams(
            dimension_semantics=("parallel", "parallel")),
    )(emb, emb, w1, b1, w2l, b2l, w2a, b2a, aa)


# ----------------------------------------------------------------------------
# Kernel 2: fused per-edge weighting + reconstruction loss
# ----------------------------------------------------------------------------
def make_edge_loss_kernel(scale):
    def kernel(params_ref,
               plk_ref, paa_ref,
               pos_l_ref, pos_a_ref, pos_d_ref, pos_m_ref,
               neg_l_ref, neg_a_ref, neg_d_ref, neg_m_ref,
               pre_ref, loss_ref):
        # params (SMEM): [emb_weight, structure_weight, t_delete, sigma]
        w_emb = params_ref[0]
        w_str = params_ref[1]
        t_del = params_ref[2]
        sigma = params_ref[3]

        # potential-edge pre-weights (padding lanes are sliced off host-side)
        pre = _sigmoid(w_emb * plk_ref[...] + w_str * paa_ref[...])
        pre = jnp.maximum(pre, 0.0)                      # F.relu (no-op after sigmoid)
        pre_ref[...] = jnp.where(pre < t_del, jnp.zeros_like(pre), pre)

        # weighted reconstruction loss; masks zero out the lane/sublane padding
        pos = _sigmoid(w_emb * pos_l_ref[...] + w_str * pos_a_ref[...])
        neg = _sigmoid(w_emb * neg_l_ref[...] + w_str * neg_a_ref[...])
        pos_w = jnp.exp(-jnp.square(pos_d_ref[...] / sigma)) * pos_m_ref[...]
        # TODO(synk): exp(+(d/sigma)^2) matches the reference module exactly but is
        # numerically fragile (can overflow for large feature distances).
        neg_w = jnp.exp(jnp.square(neg_d_ref[...] / sigma)) * neg_m_ref[...]
        pos_loss = jnp.sum(pos_w * jnp.square(pos - 1.0))
        neg_loss = jnp.sum(neg_w * jnp.square(neg))
        loss_ref[0, 0] = (pos_loss + neg_loss) * scale

    return kernel


def run_edge_scores_and_loss(params_vec, poten_link, poten_aa,
                             pos_link, pos_aa, pos_d, pos_mask,
                             neg_link, neg_aa, neg_d, neg_mask,
                             num_nodes, num_edges_total):
    scale = float(num_nodes) / float(num_edges_total)
    vmem = pl.BlockSpec(memory_space=pltpu.MemorySpace.VMEM)
    smem = pl.BlockSpec(memory_space=pltpu.MemorySpace.SMEM)
    return pl.pallas_call(
        make_edge_loss_kernel(scale),
        out_shape=(jax.ShapeDtypeStruct(poten_link.shape, jnp.float32),
                   jax.ShapeDtypeStruct((1, 1), jnp.float32)),
        in_specs=[smem] + [vmem] * 10,
        out_specs=(vmem, smem),
    )(params_vec, poten_link, poten_aa,
      pos_link, pos_aa, pos_d, pos_mask,
      neg_link, neg_aa, neg_d, neg_mask)


# ----------------------------------------------------------------------------
# lane/sublane-dense packing of per-edge vectors
# ----------------------------------------------------------------------------
def _edge_rows(e):
    rows = -(-e // LANES)                       # ceil(E / 128)
    return max(SUBLANES, -(-rows // SUBLANES) * SUBLANES)


def _pack_edges(x_1d):
    e = x_1d.shape[0]
    rows = _edge_rows(e)
    xp = jnp.pad(x_1d.astype(jnp.float32), (0, rows * LANES - e))
    return xp.reshape(rows, LANES)


def _pack_mask(e):
    rows = _edge_rows(e)
    return (jnp.arange(rows * LANES) < e).astype(jnp.float32).reshape(rows, LANES)


# ----------------------------------------------------------------------------
# forward pass (Pallas) and pure-JAX reference
# ----------------------------------------------------------------------------
def ewnet_forward(params, emb, aa, features_diff, poten_edge, pos_edge, neg_edge,
                  t_delete, sigma):
    H = params["wl2"].shape[1]
    zeros_h = jnp.zeros((H, H), jnp.float32)
    # pack both MLP branches into one fused weight set (host-side, once)
    w1 = jnp.concatenate([params["wl1"], params["wa1"]], axis=1)   # (D, 2H)
    b1 = jnp.concatenate([params["bl1"], params["ba1"]], axis=1)   # (1, 2H)
    w2l = jnp.concatenate([params["wl2"], zeros_h], axis=0)        # (2H, H)
    w2a = jnp.concatenate([zeros_h, params["wa2"]], axis=0)        # (2H, H)

    link_ctx, aa_ctx = run_contexts(emb, aa, w1, b1,
                                    w2l, params["bl2"], w2a, params["ba2"])

    pvec = jnp.concatenate([
        params["emb_weight"], params["structure_weight"],
        jnp.array([t_delete], jnp.float32), jnp.array([sigma], jnp.float32),
    ]).astype(jnp.float32)

    # sparse gathers at (static) edge indices -- plain JAX glue between kernels
    p_src, p_dst = poten_edge
    n_poten = p_src.shape[0]
    poten_link = _pack_edges(link_ctx[p_src, p_dst])
    poten_aa = _pack_edges(aa_ctx[p_src, p_dst])

    pos_src, pos_dst = pos_edge
    neg_src, neg_dst = neg_edge
    n_pos = pos_src.shape[0]
    n_neg = neg_src.shape[0]
    pos_link = _pack_edges(link_ctx[pos_src, pos_dst])
    pos_aa = _pack_edges(aa_ctx[pos_src, pos_dst])
    pos_d = _pack_edges(features_diff[pos_src, pos_dst])
    pos_m = _pack_mask(n_pos)
    neg_link = _pack_edges(link_ctx[neg_src, neg_dst])
    neg_aa = _pack_edges(aa_ctx[neg_src, neg_dst])
    neg_d = _pack_edges(features_diff[neg_src, neg_dst])
    neg_m = _pack_mask(n_neg)

    pre_padded, loss = run_edge_scores_and_loss(
        pvec, poten_link, poten_aa,
        pos_link, pos_aa, pos_d, pos_m,
        neg_link, neg_aa, neg_d, neg_m,
        emb.shape[0], n_pos + n_neg)

    pre_weights = pre_padded.reshape(-1)[:n_poten]
    return loss[0, 0], pre_weights


def reference_forward(params, emb, aa, features_diff, poten_edge, pos_edge, neg_edge,
                      t_delete, sigma):
    def mlp(x, w1, b1, w2, b2):
        h = jnp.maximum(x @ w1 + b1, 0.0)
        return h @ w2 + b2

    def sig(x):
        return 1.0 / (1.0 + jnp.exp(-x))

    ll = mlp(emb, params["wl1"], params["bl1"], params["wl2"], params["bl2"])
    la = mlp(emb, params["wa1"], params["ba1"], params["wa2"], params["ba2"])
    link_ctx = sig(ll @ ll.T)
    aa_ctx = sig((la @ la.T) * aa)

    w_emb = params["emb_weight"][0]
    w_str = params["structure_weight"][0]

    p_src, p_dst = poten_edge
    pre = sig(w_emb * link_ctx[p_src, p_dst] + w_str * aa_ctx[p_src, p_dst])
    pre = jnp.maximum(pre, 0.0)
    pre = jnp.where(pre < t_delete, 0.0, pre)

    pos_src, pos_dst = pos_edge
    neg_src, neg_dst = neg_edge
    pos = sig(w_emb * link_ctx[pos_src, pos_dst] + w_str * aa_ctx[pos_src, pos_dst])
    neg = sig(w_emb * link_ctx[neg_src, neg_dst] + w_str * aa_ctx[neg_src, neg_dst])
    pos_loss = jnp.exp(-jnp.square(features_diff[pos_src, pos_dst] / sigma)) @ jnp.square(pos - 1.0)
    neg_loss = jnp.exp(jnp.square(features_diff[neg_src, neg_dst] / sigma)) @ jnp.square(neg)
    rec_loss = (pos_loss + neg_loss) * emb.shape[0] / (neg_src.shape[0] + pos_src.shape[0])
    return rec_loss, pre


# ----------------------------------------------------------------------------
# host-side graph setup (mirrors __init__ logic of the torch module)
# ----------------------------------------------------------------------------
def get_poten_edge(edge_index, features, n_p):
    if n_p == 0:
        return edge_index
    N = features.shape[0]
    norms = np.linalg.norm(features, axis=1)
    poten = []
    for i in range(N):
        sim = features @ features[i] / (norms[i] * norms)
        top = np.argsort(-sim)[:n_p]
        poten.append([i, i])
        cand = set(int(t) for t in top)
        cand.update(int(j) for j in edge_index[1, edge_index[0] == i])
        for j in sorted(cand):
            if j > i:
                poten.append([i, j])
    poten = np.asarray(poten, dtype=np.int32).T
    # to_undirected: add reverse edges + coalesce (dedupe, sorted)
    src = np.concatenate([poten[0], poten[1]])
    dst = np.concatenate([poten[1], poten[0]])
    pairs = np.unique(np.stack([src, dst], axis=1), axis=0)
    return pairs.T.astype(np.int32)


def negative_sampling_np(edge_index, num_nodes, num_neg, seed=1):
    # TODO(synk): torch_geometric.utils.negative_sampling is randomized; this is a
    # deterministic host-side stand-in with the same contract (non-edges, no self loops).
    rng = np.random.RandomState(seed)
    edge_set = set(map(tuple, edge_index.T.tolist()))
    neg, trials = [], 0
    while len(neg) < num_neg and trials < 200 * num_neg:
        i = int(rng.randint(num_nodes))
        j = int(rng.randint(num_nodes))
        trials += 1
        if i == j or (i, j) in edge_set:
            continue
        neg.append((i, j))
    return np.asarray(neg, dtype=np.int32).T


# ----------------------------------------------------------------------------
# main
# ----------------------------------------------------------------------------
if __name__ == "__main__":
    N, D, H, F_DIM = 16, 32, 32, 32          # nodes, embedding_dim, hidden_dim, feature dim
    N_P, N_N = 4, 2                          # args.n_p, args.n_n
    T_DELETE, SIGMA = 0.1, 10.0              # args.t_delete, args.sigma

    key = jax.random.PRNGKey(0)
    keys = jax.random.split(key, 10)

    # deterministic small graph: undirected ring + a few random chords
    rng = np.random.RandomState(0)
    ring = np.stack([np.arange(N), (np.arange(N) + 1) % N])
    extra = rng.randint(0, N, size=(2, 6))
    ei = np.concatenate([ring, extra], axis=1)
    ei = ei[:, ei[0] != ei[1]]
    pairs = np.unique(np.concatenate([ei, ei[::-1]], axis=1).T, axis=0)
    edge_index = pairs.T.astype(np.int32)

    # node features (used for poten_edge / features_diff in __init__)
    features = np.asarray(jax.random.normal(keys[0], (N, F_DIM), dtype=jnp.float32))
    poten_edge = get_poten_edge(edge_index, features, N_P)

    feats = jnp.asarray(features)
    features_diff = jnp.sqrt(jnp.maximum(
        jnp.sum(jnp.square(feats[:, None, :] - feats[None, :, :]), axis=-1), 0.0))

    neg_edge = negative_sampling_np(edge_index, N, N_N * N, seed=1)
    neg_edge = neg_edge[:, neg_edge[0] < neg_edge[1]]
    pos_edge = edge_index[:, edge_index[0] < edge_index[1]]

    # deterministic parameter init (PyTorch nn.Linear-style uniform); weights stored (in, out)
    def linear_init(k, fan_in, fan_out):
        k1, k2 = jax.random.split(k)
        bound = 1.0 / np.sqrt(fan_in)
        w = jax.random.uniform(k1, (fan_in, fan_out), minval=-bound, maxval=bound,
                               dtype=jnp.float32)
        b = jax.random.uniform(k2, (1, fan_out), minval=-bound, maxval=bound,
                               dtype=jnp.float32)
        return w, b

    wl1, bl1 = linear_init(keys[1], D, H)
    wl2, bl2 = linear_init(keys[2], H, H)
    wa1, ba1 = linear_init(keys[3], D, H)
    wa2, ba2 = linear_init(keys[4], H, H)
    params = dict(
        wl1=wl1, bl1=bl1, wl2=wl2, bl2=bl2,
        wa1=wa1, ba1=ba1, wa2=wa2, ba2=ba2,
        emb_weight=jax.random.uniform(keys[5], (1,), dtype=jnp.float32),
        structure_weight=jax.random.uniform(keys[6], (1,), dtype=jnp.float32),
    )

    # forward inputs
    emb = jax.random.normal(keys[7], (N, D), dtype=jnp.float32)
    aa_raw = jax.random.uniform(keys[8], (N, N), dtype=jnp.float32)
    aa = (aa_raw + aa_raw.T) * 0.5            # symmetric structural-similarity matrix

    rec_loss, pre_weights = ewnet_forward(params, emb, aa, features_diff,
                                          poten_edge, pos_edge, neg_edge,
                                          T_DELETE, SIGMA)
    jax.block_until_ready((rec_loss, pre_weights))

    ref_loss, ref_pre = reference_forward(params, emb, aa, features_diff,
                                          poten_edge, pos_edge, neg_edge,
                                          T_DELETE, SIGMA)
    np.testing.assert_allclose(np.asarray(rec_loss), np.asarray(ref_loss),
                               rtol=2e-4, atol=2e-4)
    np.testing.assert_allclose(np.asarray(pre_weights), np.asarray(ref_pre),
                               rtol=2e-4, atol=2e-4)
    print("KERNEL_OK")
</pallas_src>

<mosaic_0001>
module attributes {stable_mosaic.version = 11 : i64} {
  func.func @ctx_kernel(%arg0: i32, %arg1: i32, %arg2: memref<16x32xf32, #tpu.memory_space<vmem>>, %arg3: memref<16x32xf32, #tpu.memory_space<vmem>>, %arg4: memref<32x64xf32, #tpu.memory_space<vmem>>, %arg5: memref<1x64xf32, #tpu.memory_space<vmem>>, %arg6: memref<64x32xf32, #tpu.memory_space<vmem>>, %arg7: memref<1x32xf32, #tpu.memory_space<vmem>>, %arg8: memref<64x32xf32, #tpu.memory_space<vmem>>, %arg9: memref<1x32xf32, #tpu.memory_space<vmem>>, %arg10: memref<16x16xf32, #tpu.memory_space<vmem>>, %arg11: memref<16x16xf32, #tpu.memory_space<vmem>>, %arg12: memref<16x16xf32, #tpu.memory_space<vmem>>) attributes {dimension_semantics = [#tpu.dimension_semantics<parallel>, #tpu.dimension_semantics<parallel>], iteration_bounds = array<i64: 1, 1>, scalar_prefetch = 0 : i64, scratch_operands = 0 : i64, tpu.core_type = #tpu.core_type<tc>, window_params = [{transform_indices = @transform_0, window_bounds = array<i64: 16, 32>}, {transform_indices = @transform_1, window_bounds = array<i64: 16, 32>}, {pipeline_mode = #tpu.pipeline_mode<synchronous>, transform_indices = @transform_2, window_bounds = array<i64: 32, 64>}, {pipeline_mode = #tpu.pipeline_mode<synchronous>, transform_indices = @transform_3, window_bounds = array<i64: 1, 64>}, {pipeline_mode = #tpu.pipeline_mode<synchronous>, transform_indices = @transform_4, window_bounds = array<i64: 64, 32>}, {pipeline_mode = #tpu.pipeline_mode<synchronous>, transform_indices = @transform_5, window_bounds = array<i64: 1, 32>}, {pipeline_mode = #tpu.pipeline_mode<synchronous>, transform_indices = @transform_6, window_bounds = array<i64: 64, 32>}, {pipeline_mode = #tpu.pipeline_mode<synchronous>, transform_indices = @transform_7, window_bounds = array<i64: 1, 32>}, {transform_indices = @transform_8, window_bounds = array<i64: 16, 16>}, {transform_indices = @transform_9, window_bounds = array<i64: 16, 16>}, {transform_indices = @transform_10, window_bounds = array<i64: 16, 16>}]} {
    %c0 = arith.constant 0 : index
    %c0_0 = arith.constant 0 : index
    %0 = vector.load %arg2[%c0, %c0_0] : memref<16x32xf32, #tpu.memory_space<vmem>>, vector<16x32xf32>
    %c0_1 = arith.constant 0 : index
    %c0_2 = arith.constant 0 : index
    %1 = vector.load %arg4[%c0_1, %c0_2] : memref<32x64xf32, #tpu.memory_space<vmem>>, vector<32x64xf32>
    %cst = arith.constant dense<0.000000e+00> : vector<16x64xf32>
    %2 = tpu.matmul %0, %1, %cst {dimension_numbers = #tpu.dot_dimension_numbers<[1], [0], [0], [1], [0, 0, 1, 1], [], []>} : vector<16x32xf32>, vector<32x64xf32>, vector<16x64xf32> -> vector<16x64xf32>
    %c0_3 = arith.constant 0 : index
    %c0_4 = arith.constant 0 : index
    %3 = vector.load %arg5[%c0_3, %c0_4] : memref<1x64xf32, #tpu.memory_space<vmem>>, vector<1x64xf32>
    %4 = vector.broadcast %3 : vector<1x64xf32> to vector<16x64xf32>
    %5 = arith.addf %2, %4 : vector<16x64xf32>
    %cst_5 = arith.constant 0.000000e+00 : f32
    %6 = vector.broadcast %cst_5 : f32 to vector<16x64xf32>
    %7 = arith.maximumf %5, %6 : vector<16x64xf32>
    %c0_6 = arith.constant 0 : index
    %c0_7 = arith.constant 0 : index
    %8 = vector.load %arg6[%c0_6, %c0_7] : memref<64x32xf32, #tpu.memory_space<vmem>>, vector<64x32xf32>
    %cst_8 = arith.constant dense<0.000000e+00> : vector<16x32xf32>
    %9 = tpu.matmul %7, %8, %cst_8 {dimension_numbers = #tpu.dot_dimension_numbers<[1], [0], [0], [1], [0, 0, 1, 1], [], []>} : vector<16x64xf32>, vector<64x32xf32>, vector<16x32xf32> -> vector<16x32xf32>
    %c0_9 = arith.constant 0 : index
    %c0_10 = arith.constant 0 : index
    %10 = vector.load %arg7[%c0_9, %c0_10] : memref<1x32xf32, #tpu.memory_space<vmem>>, vector<1x32xf32>
    %11 = vector.broadcast %10 : vector<1x32xf32> to vector<16x32xf32>
    %12 = arith.addf %9, %11 : vector<16x32xf32>
    %c0_11 = arith.constant 0 : index
    %c0_12 = arith.constant 0 : index
    %13 = vector.load %arg8[%c0_11, %c0_12] : memref<64x32xf32, #tpu.memory_space<vmem>>, vector<64x32xf32>
    %cst_13 = arith.constant dense<0.000000e+00> : vector<16x32xf32>
    %14 = tpu.matmul %7, %13, %cst_13 {dimension_numbers = #tpu.dot_dimension_numbers<[1], [0], [0], [1], [0, 0, 1, 1], [], []>} : vector<16x64xf32>, vector<64x32xf32>, vector<16x32xf32> -> vector<16x32xf32>
    %c0_14 = arith.constant 0 : index
    %c0_15 = arith.constant 0 : index
    %15 = vector.load %arg9[%c0_14, %c0_15] : memref<1x32xf32, #tpu.memory_space<vmem>>, vector<1x32xf32>
    %16 = vector.broadcast %15 : vector<1x32xf32> to vector<16x32xf32>
    %17 = arith.addf %14, %16 : vector<16x32xf32>
    %c0_16 = arith.constant 0 : index
    %c0_17 = arith.constant 0 : index
    %18 = vector.load %arg3[%c0_16, %c0_17] : memref<16x32xf32, #tpu.memory_space<vmem>>, vector<16x32xf32>
    %c0_18 = arith.constant 0 : index
    %c0_19 = arith.constant 0 : index
    %19 = vector.load %arg4[%c0_18, %c0_19] : memref<32x64xf32, #tpu.memory_space<vmem>>, vector<32x64xf32>
    %cst_20 = arith.constant dense<0.000000e+00> : vector<16x64xf32>
    %20 = tpu.matmul %18, %19, %cst_20 {dimension_numbers = #tpu.dot_dimension_numbers<[1], [0], [0], [1], [0, 0, 1, 1], [], []>} : vector<16x32xf32>, vector<32x64xf32>, vector<16x64xf32> -> vector<16x64xf32>
    %c0_21 = arith.constant 0 : index
    %c0_22 = arith.constant 0 : index
    %21 = vector.load %arg5[%c0_21, %c0_22] : memref<1x64xf32, #tpu.memory_space<vmem>>, vector<1x64xf32>
    %22 = vector.broadcast %21 : vector<1x64xf32> to vector<16x64xf32>
    %23 = arith.addf %20, %22 : vector<16x64xf32>
    %cst_23 = arith.constant 0.000000e+00 : f32
    %24 = vector.broadcast %cst_23 : f32 to vector<16x64xf32>
    %25 = arith.maximumf %23, %24 : vector<16x64xf32>
    %c0_24 = arith.constant 0 : index
    %c0_25 = arith.constant 0 : index
    %26 = vector.load %arg6[%c0_24, %c0_25] : memref<64x32xf32, #tpu.memory_space<vmem>>, vector<64x32xf32>
    %cst_26 = arith.constant dense<0.000000e+00> : vector<16x32xf32>
    %27 = tpu.matmul %25, %26, %cst_26 {dimension_numbers = #tpu.dot_dimension_numbers<[1], [0], [0], [1], [0, 0, 1, 1], [], []>} : vector<16x64xf32>, vector<64x32xf32>, vector<16x32xf32> -> vector<16x32xf32>
    %c0_27 = arith.constant 0 : index
    %c0_28 = arith.constant 0 : index
    %28 = vector.load %arg7[%c0_27, %c0_28] : memref<1x32xf32, #tpu.memory_space<vmem>>, vector<1x32xf32>
    %29 = vector.broadcast %28 : vector<1x32xf32> to vector<16x32xf32>
    %30 = arith.addf %27, %29 : vector<16x32xf32>
    %c0_29 = arith.constant 0 : index
    %c0_30 = arith.constant 0 : index
    %31 = vector.load %arg8[%c0_29, %c0_30] : memref<64x32xf32, #tpu.memory_space<vmem>>, vector<64x32xf32>
    %cst_31 = arith.constant dense<0.000000e+00> : vector<16x32xf32>
    %32 = tpu.matmul %25, %31, %cst_31 {dimension_numbers = #tpu.dot_dimension_numbers<[1], [0], [0], [1], [0, 0, 1, 1], [], []>} : vector<16x64xf32>, vector<64x32xf32>, vector<16x32xf32> -> vector<16x32xf32>
    %c0_32 = arith.constant 0 : index
    %c0_33 = arith.constant 0 : index
    %33 = vector.load %arg9[%c0_32, %c0_33] : memref<1x32xf32, #tpu.memory_space<vmem>>, vector<1x32xf32>
    %34 = vector.broadcast %33 : vector<1x32xf32> to vector<16x32xf32>
    %35 = arith.addf %32, %34 : vector<16x32xf32>
    %cst_34 = arith.constant dense<0.000000e+00> : vector<16x16xf32>
    %36 = tpu.matmul %12, %30, %cst_34 {dimension_numbers = #tpu.dot_dimension_numbers<[1], [1], [0], [0], [0, 0, 1, 0], [], []>} : vector<16x32xf32>, vector<16x32xf32>, vector<16x16xf32> -> vector<16x16xf32>
    %cst_35 = arith.constant dense<0.000000e+00> : vector<16x16xf32>
    %37 = tpu.matmul %17, %35, %cst_35 {dimension_numbers = #tpu.dot_dimension_numbers<[1], [1], [0], [0], [0, 0, 1, 0], [], []>} : vector<16x32xf32>, vector<16x32xf32>, vector<16x16xf32> -> vector<16x16xf32>
    %cst_36 = arith.constant 0.000000e+00 : f32
    %38 = vector.broadcast %cst_36 : f32 to vector<16x16xf32>
    %39 = arith.subf %38, %36 : vector<16x16xf32>
    %40 = math.exp %39 : vector<16x16xf32>
    %cst_37 = arith.constant 1.000000e+00 : f32
    %41 = vector.broadcast %cst_37 : f32 to vector<16x16xf32>
    %42 = arith.addf %41, %40 : vector<16x16xf32>
    %cst_38 = arith.constant 1.000000e+00 : f32
    %43 = vector.broadcast %cst_38 : f32 to vector<16x16xf32>
    %44 = arith.divf %43, %42 : vector<16x16xf32>
    %c0_39 = arith.constant 0 : index
    %c0_40 = arith.constant 0 : index
    %45 = vector.load %arg11[%c0_39, %c0_40] : memref<16x16xf32, #tpu.memory_space<vmem>>, vector<16x16xf32>
    tpu.vector_store %arg11[%c0_39, %c0_40], %44 {strides = array<i32>} : memref<16x16xf32, #tpu.memory_space<vmem>>, vector<16x16xf32>,
    %c0_41 = arith.constant 0 : index
    %c0_42 = arith.constant 0 : index
    %46 = vector.load %arg10[%c0_41, %c0_42] : memref<16x16xf32, #tpu.memory_space<vmem>>, vector<16x16xf32>
    %47 = arith.mulf %37, %46 : vector<16x16xf32>
    %cst_43 = arith.constant 0.000000e+00 : f32
    %48 = vector.broadcast %cst_43 : f32 to vector<16x16xf32>
    %49 = arith.subf %48, %47 : vector<16x16xf32>
    %50 = math.exp %49 : vector<16x16xf32>
    %cst_44 = arith.constant 1.000000e+00 : f32
    %51 = vector.broadcast %cst_44 : f32 to vector<16x16xf32>
    %52 = arith.addf %51, %50 : vector<16x16xf32>
    %cst_45 = arith.constant 1.000000e+00 : f32
    %53 = vector.broadcast %cst_45 : f32 to vector<16x16xf32>
    %54 = arith.divf %53, %52 : vector<16x16xf32>
    %c0_46 = arith.constant 0 : index
    %c0_47 = arith.constant 0 : index
    %55 = vector.load %arg12[%c0_46, %c0_47] : memref<16x16xf32, #tpu.memory_space<vmem>>, vector<16x16xf32>
    tpu.vector_store %arg12[%c0_46, %c0_47], %54 {strides = array<i32>} : memref<16x16xf32, #tpu.memory_space<vmem>>, vector<16x16xf32>,
    return
  }
  func.func @transform_0(%arg0: i32, %arg1: i32) -> (i32, i32) {
    %c0_i32 = arith.constant 0 : i32
    %c0_i32_0 = arith.constant 0 : i32
    return %arg0, %c0_i32 : i32, i32
  }
  func.func @transform_1(%arg0: i32, %arg1: i32) -> (i32, i32) {
    %c0_i32 = arith.constant 0 : i32
    %c0_i32_0 = arith.constant 0 : i32
    return %arg1, %c0_i32 : i32, i32
  }
  func.func @transform_2(%arg0: i32, %arg1: i32) -> (i32, i32) {
    %c0_i32 = arith.constant 0 : i32
    %c0_i32_0 = arith.constant 0 : i32
    %c0_i32_1 = arith.constant 0 : i32
    return %c0_i32, %c0_i32_0 : i32, i32
  }
  func.func @transform_3(%arg0: i32, %arg1: i32) -> (i32, i32) {
    %c0_i32 = arith.constant 0 : i32
    %c0_i32_0 = arith.constant 0 : i32
    %c0_i32_1 = arith.constant 0 : i32
    return %c0_i32, %c0_i32_0 : i32, i32
  }
  func.func @transform_4(%arg0: i32, %arg1: i32) -> (i32, i32) {
    %c0_i32 = arith.constant 0 : i32
    %c0_i32_0 = arith.constant 0 : i32
    %c0_i32_1 = arith.constant 0 : i32
    return %c0_i32, %c0_i32_0 : i32, i32
  }
  func.func @transform_5(%arg0: i32, %arg1: i32) -> (i32, i32) {
    %c0_i32 = arith.constant 0 : i32
    %c0_i32_0 = arith.constant 0 : i32
    %c0_i32_1 = arith.constant 0 : i32
    return %c0_i32, %c0_i32_0 : i32, i32
  }
  func.func @transform_6(%arg0: i32, %arg1: i32) -> (i32, i32) {
    %c0_i32 = arith.constant 0 : i32
    %c0_i32_0 = arith.constant 0 : i32
    %c0_i32_1 = arith.constant 0 : i32
    return %c0_i32, %c0_i32_0 : i32, i32
  }
  func.func @transform_7(%arg0: i32, %arg1: i32) -> (i32, i32) {
    %c0_i32 = arith.constant 0 : i32
    %c0_i32_0 = arith.constant 0 : i32
    %c0_i32_1 = arith.constant 0 : i32
    return %c0_i32, %c0_i32_0 : i32, i32
  }
  func.func @transform_8(%arg0: i32, %arg1: i32) -> (i32, i32) {
    %c0_i32 = arith.constant 0 : i32
    return %arg0, %arg1 : i32, i32
  }
  func.func @transform_9(%arg0: i32, %arg1: i32) -> (i32, i32) {
    %c0_i32 = arith.constant 0 : i32
    return %arg0, %arg1 : i32, i32
  }
  func.func @transform_10(%arg0: i32, %arg1: i32) -> (i32, i32) {
    %c0_i32 = arith.constant 0 : i32
    return %arg0, %arg1 : i32, i32
  }
}

</mosaic_0001>

<llo_original>
// kernel: tpu_custom_call.1
$region0: #{tpu_custom_call.1}
  #allocation0 [shape = 'u32[]', space=smem, size = 0x4, offset = 0x4, fixed_abs, tag = 'smem constant byte address 0x4 - core index']
  #allocation1 [shape = 'u32[144,128]{1,0:T(1,128)}', space=vmem, size = 0x12000, scoped, tag = 'internal scratch']
  %s0 = inlined_call_operand.vmem [shape: f32[16,32], index: 0, kind: input, shape index: {}]
  %s1 = inlined_call_operand.vmem [shape: f32[16,32], index: 1, kind: input, shape index: {}]
  %s2 = inlined_call_operand.vmem [shape: f32[32,64], index: 2, kind: input, shape index: {}]
  %s3 = inlined_call_operand.vmem [shape: f32[1,64], index: 3, kind: input, shape index: {}]
  %s4 = inlined_call_operand.vmem [shape: f32[64,32], index: 4, kind: input, shape index: {}]
  %s5 = inlined_call_operand.vmem [shape: f32[1,32], index: 5, kind: input, shape index: {}]
  %s6 = inlined_call_operand.vmem [shape: f32[64,32], index: 6, kind: input, shape index: {}]
  %s7 = inlined_call_operand.vmem [shape: f32[1,32], index: 7, kind: input, shape index: {}]
  %s8 = inlined_call_operand.vmem [shape: f32[16,16], index: 8, kind: input, shape index: {}]
  %s9 = inlined_call_operand.hbm [shape: f32[16,16], index: 9, kind: output, shape index: {0}]
  %s10 = inlined_call_operand.hbm [shape: f32[16,16], index: 10, kind: output, shape index: {1}]
  %11 = xla_tuple %s9, %s10
  %s12 = sld [smem:[#allocation0]]
  $region54: #{tpu_custom_call.1} parent=0
    _
  %s14 = ssub.s32 1, %s12
  %s15 = scalar_select 0, %s14, %s12
  $region1: #{tpu_custom_call.1} parent=0
    #allocation2 [shape = 'u8[8192]{0}', space=vmem, size = 0x2000, scoped, tag = 'output window, operand 0, single buffered']
    #allocation3 [shape = 's32[1]{0}', space=sflag, size = 0x4, scoped, tag = 'scoped memory for tpu_custom_call.1']
    #allocation4 [shape = 'u8[8192]{0}', space=vmem, size = 0x2000, scoped, tag = 'output window, operand 1, single buffered']
    #allocation5 [shape = 's32[1]{0}', space=sflag, size = 0x4, scoped, tag = 'scoped memory for tpu_custom_call.1']
    %16 = vsyncpa [#allocation3], 0
    %17 = vsyncpa [#allocation5], 0
    // Predicated region
    $region2: #{tpu_custom_call.1} parent=1 // pred_check
      _
    $region3: #{tpu_custom_call.1} parent=1 // pred_check_branch
      %19 = sbr.rel (0) target = $region5
    $region4: #{tpu_custom_call.1} parent=1 // pred_region
      _
    $region5: #{tpu_custom_call.1} parent=1 // pred_fallthru
      _
    // Predicated region
    $region6: #{tpu_custom_call.1} parent=1 // pred_check
      _
    $region7: #{tpu_custom_call.1} parent=1 // pred_check_branch
      %21 = sbr.rel (0) target = $region9
    $region8: #{tpu_custom_call.1} parent=1 // pred_region
      _
    $region9: #{tpu_custom_call.1} parent=1 // pred_fallthru
      _
    // Predicated region
    $region10: #{tpu_custom_call.1} parent=1 // pred_check
      _
    $region11: #{tpu_custom_call.1} parent=1 // pred_check_branch
      %23 = sbr.rel (0) target = $region13
    $region12: #{tpu_custom_call.1} parent=1 // pred_region
      _
    $region13: #{tpu_custom_call.1} parent=1 // pred_fallthru
      _
    // Predicated region
    $region14: #{tpu_custom_call.1} parent=1 // pred_check
      _
    $region15: #{tpu_custom_call.1} parent=1 // pred_check_branch
      %25 = sbr.rel (0) target = $region17
    $region16: #{tpu_custom_call.1} parent=1 // pred_region
      _
    $region17: #{tpu_custom_call.1} parent=1 // pred_fallthru
      _
    // Predicated region
    $region18: #{tpu_custom_call.1} parent=1 // pred_check
      _
    $region19: #{tpu_custom_call.1} parent=1 // pred_check_branch
      %27 = sbr.rel (0) target = $region21
    $region20: #{tpu_custom_call.1} parent=1 // pred_region
      _
    $region21: #{tpu_custom_call.1} parent=1 // pred_fallthru
      _
    // Predicated region
    $region22: #{tpu_custom_call.1} parent=1 // pred_check
      _
    $region23: #{tpu_custom_call.1} parent=1 // pred_check_branch
      %29 = sbr.rel (0) target = $region25
    $region24: #{tpu_custom_call.1} parent=1 // pred_region
      _
    $region25: #{tpu_custom_call.1} parent=1 // pred_fallthru
      _
    // Predicated region
    $region26: #{tpu_custom_call.1} parent=1 // pred_check
      _
    $region27: #{tpu_custom_call.1} parent=1 // pred_check_branch
      %31 = sbr.rel (0) target = $region29
    $region28: #{tpu_custom_call.1} parent=1 // pred_region
      _
    $region29: #{tpu_custom_call.1} parent=1 // pred_fallthru
      _
    // Predicated region
    $region30: #{tpu_custom_call.1} parent=1 // pred_check
      _
    $region31: #{tpu_custom_call.1} parent=1 // pred_check_branch
      %33 = sbr.rel (0) target = $region33
    $region32: #{tpu_custom_call.1} parent=1 // pred_region
      _
    $region33: #{tpu_custom_call.1} parent=1 // pred_fallthru
      _
    // Predicated region
    $region34: #{tpu_custom_call.1} parent=1 // pred_check
      _
    $region35: #{tpu_custom_call.1} parent=1 // pred_check_branch
      %35 = sbr.rel (0) target = $region37
    $region36: #{tpu_custom_call.1} parent=1 // pred_region
      _
    $region37: #{tpu_custom_call.1} parent=1 // pred_fallthru
      _
    %v36 = vld [vmem:[%s0] sm:$0xff]
    %v37 = vld [vmem:[%s0 + $0x8] sm:$0xff]
    %v38 = vld [vmem:[%s2] sm:$0xff]
    %v39 = vld [vmem:[%s2 + $0x8] sm:$0xff]
    %v40 = vld [vmem:[%s2 + $0x10] sm:$0xff]
    %v41 = vld [vmem:[%s2 + $0x18] sm:$0xff]
    %v42 = vld [vmem:[%s3] sm:$0x1]
    %v44 = vlaneseq
    %v45 = vshrl.u32 %v44, 7
    %v46 = vsub.s32 0, %v45
    %v47 = vrot.slane %v42, %v46
    %vm49 = vcmask 261120
    %v51 = vsel %vm49, %v36, 0
    %v54 = vsel %vm49, %v37, 0
    %56 = vmatprep.subr.mxu0 0.0
    %57 = vmatpush1.msra.mxu0 %v38
    %58 = vmatprep.subr.mxu0 0.0
    %59 = vmatpush1.msra.mxu0 %v39
    %60 = vmatprep.subr.mxu0 0.0
    %61 = vmatpush1.msra.mxu0 %v40
    %62 = vmatprep.subr.mxu0 0.0
    %63 = vmatpush1.msra.mxu0 %v41
    %64 = vmatprep.subr.mxu0 0.0
    %65 = vmatpush1.msra.mxu0 0.0
    %66 = vmatprep.subr.mxu0 0.0
    %67 = vmatpush1.msra.mxu0 0.0
    %68 = vmatprep.subr.mxu0 0.0
    %69 = vmatpush1.msra.mxu0 0.0
    %70 = vmatprep.subr.mxu0 0.0
    %71 = vmatpush1.msra.mxu0 0.0
    %72 = vmatprep.subr.mxu0 0.0
    %73 = vmatpush1.msra.mxu0 0.0
    %74 = vmatprep.subr.mxu0 0.0
    %75 = vmatpush1.msra.mxu0 0.0
    %76 = vmatprep.subr.mxu0 0.0
    %77 = vmatpush1.msra.mxu0 0.0
    %78 = vmatprep.subr.mxu0 0.0
    %79 = vmatpush1.msra.mxu0 0.0
    %80 = vmatprep.subr.mxu0 0.0
    %81 = vmatpush1.msra.mxu0 0.0
    %82 = vmatprep.subr.mxu0 0.0
    %83 = vmatpush1.msra.mxu0 0.0
    %84 = vmatprep.subr.mxu0 0.0
    %85 = vmatpush1.msra.mxu0 0.0
    %86 = vmatprep.subr.mxu0 0.0
    %87 = vmatpush1.msra.mxu0 0.0
    %88 = vmatprep.subr.mxu0 0.0
    %89 = vmatpush1.msra.mxu0 0.0
    %90 = vmatprep.subr.mxu0 0.0
    %91 = vmatpush1.msra.mxu0 0.0
    %92 = vmatprep.subr.mxu0 0.0
    %93 = vmatpush1.msra.mxu0 0.0
    %94 = vmatprep.subr.mxu0 0.0
    %95 = vmatpush1.msra.mxu0 0.0
    %96 = vmatprep.subr.mxu0 0.0
    %97 = vmatpush1.msra.mxu0 0.0
    %98 = vmatprep.subr.mxu0 0.0
    %99 = vmatpush1.msra.mxu0 0.0
    %100 = vmatprep.subr.mxu0 0.0
    %101 = vmatpush1.msra.mxu0 0.0
    %102 = vmatprep.subr.mxu0 0.0
    %103 = vmatpush1.msra.mxu0 0.0
    %104 = vmatprep.subr.mxu0 0.0
    %105 = vmatpush1.msra.mxu0 0.0
    %106 = vmatprep.subr.mxu0 0.0
    %107 = vmatpush1.msra.mxu0 0.0
    %108 = vmatprep.subr.mxu0 0.0
    %109 = vmatpush1.msra.mxu0 0.0
    %110 = vmatprep.subr.mxu0 0.0
    %111 = vmatpush1.msra.mxu0 0.0
    %112 = vmatprep.subr.mxu0 0.0
    %113 = vmatpush1.msra.mxu0 0.0
    %114 = vmatprep.subr.mxu0 0.0
    %115 = vmatpush1.msra.mxu0 0.0
    %116 = vmatprep.subr.mxu0 0.0
    %117 = vmatpush1.msra.mxu0 0.0
    %118 = vmatprep.subr.mxu0 0.0
    %119 = vmatpush1.msra.mxu0 0.0
    %120 = vmatprep.mubr.f32.mxu0 0.0
    %121 = vmatmul.mubr.f32.gmra.mrb[0].mxu0 %v51
    %v122 = vpop.f32.mrb[0].mxu0
    %v123 = vadd.f32 %v47, %v122
    %v124 = vpop.f32.mrb[0].mxu0
    %125 = vmatprep.mubr.f32.mxu0 0.0
    %126 = vmatmul.mubr.f32.gmra.mrb[0].mxu0 %v54
    %v127 = vpop.f32.mrb[0].mxu0
    %v128 = vadd.f32 %v47, %v127
    %v129 = vpop.f32.mrb[0].mxu0
    %130 = vdwg.mxu0
    %v131 = vmax.f32 %v123, 0.0
    %v132 = vmax.f32 %v128, 0.0
    %v133 = vld [vmem:[%s4] sm:$0xff]
    %v134 = vld [vmem:[%s4 + $0x8] sm:$0xff]
    %v135 = vld [vmem:[%s4 + $0x10] sm:$0xff]
    %v136 = vld [vmem:[%s4 + $0x18] sm:$0xff]
    %v137 = vld [vmem:[%s4 + $0x20] sm:$0xff]
    %v138 = vld [vmem:[%s4 + $0x28] sm:$0xff]
    %v139 = vld [vmem:[%s4 + $0x30] sm:$0xff]
    %v140 = vld [vmem:[%s4 + $0x38] sm:$0xff]
    %v141 = vld [vmem:[%s5] sm:$0x1]
    %v143 = vlaneseq
    %v144 = vshrl.u32 %v143, 7
    %v145 = vsub.s32 0, %v144
    %v146 = vrot.slane %v141, %v145
    %vm148 = vcmask 523264
    %v150 = vsel %vm148, %v131, 0
    %v153 = vsel %vm148, %v132, 0
    %155 = vmatprep.subr.mxu0 0.0
    %156 = vmatpush1.msra.mxu0 %v133
    %157 = vmatprep.subr.mxu0 0.0
    %158 = vmatpush1.msra.mxu0 %v134
    %159 = vmatprep.subr.mxu0 0.0
    %160 = vmatpush1.msra.mxu0 %v135
    %161 = vmatprep.subr.mxu0 0.0
    %162 = vmatpush1.msra.mxu0 %v136
    %163 = vmatprep.subr.mxu0 0.0
    %164 = vmatpush1.msra.mxu0 %v137
    %165 = vmatprep.subr.mxu0 0.0
    %166 = vmatpush1.msra.mxu0 %v138
    %167 = vmatprep.subr.mxu0 0.0
    %168 = vmatpush1.msra.mxu0 %v139
    %169 = vmatprep.subr.mxu0 0.0
    %170 = vmatpush1.msra.mxu0 %v140
    %171 = vmatprep.subr.mxu0 0.0
    %172 = vmatpush1.msra.mxu0 0.0
    %173 = vmatprep.subr.mxu0 0.0
    %174 = vmatpush1.msra.mxu0 0.0
    %175 = vmatprep.subr.mxu0 0.0
    %176 = vmatpush1.msra.mxu0 0.0
    %177 = vmatprep.subr.mxu0 0.0
    %178 = vmatpush1.msra.mxu0 0.0
    %179 = vmatprep.subr.mxu0 0.0
    %180 = vmatpush1.msra.mxu0 0.0
    %181 = vmatprep.subr.mxu0 0.0
    %182 = vmatpush1.msra.mxu0 0.0
    %183 = vmatprep.subr.mxu0 0.0
    %184 = vmatpush1.msra.mxu0 0.0
    %185 = vmatprep.subr.mxu0 0.0
    %186 = vmatpush1.msra.mxu0 0.0
    %187 = vmatprep.subr.mxu0 0.0
    %188 = vmatpush1.msra.mxu0 0.0
    %189 = vmatprep.subr.mxu0 0.0
    %190 = vmatpush1.msra.mxu0 0.0
    %191 = vmatprep.subr.mxu0 0.0
    %192 = vmatpush1.msra.mxu0 0.0
    %193 = vmatprep.subr.mxu0 0.0
    %194 = vmatpush1.msra.mxu0 0.0
    %195 = vmatprep.subr.mxu0 0.0
    %196 = vmatpush1.msra.mxu0 0.0
    %197 = vmatprep.subr.mxu0 0.0
    %198 = vmatpush1.msra.mxu0 0.0
    %199 = vmatprep.subr.mxu0 0.0
    %200 = vmatpush1.msra.mxu0 0.0
    %201 = vmatprep.subr.mxu0 0.0
    %202 = vmatpush1.msra.mxu0 0.0
    %203 = vmatprep.subr.mxu0 0.0
    %204 = vmatpush1.msra.mxu0 0.0
    %205 = vmatprep.subr.mxu0 0.0
    %206 = vmatpush1.msra.mxu0 0.0
    %207 = vmatprep.subr.mxu0 0.0
    %208 = vmatpush1.msra.mxu0 0.0
    %209 = vmatprep.subr.mxu0 0.0
    %210 = vmatpush1.msra.mxu0 0.0
    %211 = vmatprep.subr.mxu0 0.0
    %212 = vmatpush1.msra.mxu0 0.0
    %213 = vmatprep.subr.mxu0 0.0
    %214 = vmatpush1.msra.mxu0 0.0
    %215 = vmatprep.subr.mxu0 0.0
    %216 = vmatpush1.msra.mxu0 0.0
    %217 = vmatprep.subr.mxu0 0.0
    %218 = vmatpush1.msra.mxu0 0.0
    %219 = vmatprep.mubr.f32.mxu0 0.0
    %220 = vmatmul.mubr.f32.gmra.mrb[0].mxu0 %v150
    %v221 = vpop.f32.mrb[0].mxu0
    %v222 = vadd.f32 %v146, %v221
    %v223 = vpop.f32.mrb[0].mxu0
    %224 = vmatprep.mubr.f32.mxu0 0.0
    %225 = vmatmul.mubr.f32.gmra.mrb[0].mxu0 %v153
    %v226 = vpop.f32.mrb[0].mxu0
    %v227 = vadd.f32 %v146, %v226
    %v228 = vpop.f32.mrb[0].mxu0
    %229 = vdwg.mxu0
    %v230 = vld [vmem:[%s6] sm:$0xff]
    %v231 = vld [vmem:[%s6 + $0x8] sm:$0xff]
    %v232 = vld [vmem:[%s6 + $0x10] sm:$0xff]
    %v233 = vld [vmem:[%s6 + $0x18] sm:$0xff]
    %v234 = vld [vmem:[%s6 + $0x20] sm:$0xff]
    %v235 = vld [vmem:[%s6 + $0x28] sm:$0xff]
    %v236 = vld [vmem:[%s6 + $0x30] sm:$0xff]
    %v237 = vld [vmem:[%s6 + $0x38] sm:$0xff]
    %v238 = vld [vmem:[%s7] sm:$0x1]
    %v240 = vlaneseq
    %v241 = vshrl.u32 %v240, 7
    %v242 = vsub.s32 0, %v241
    %v243 = vrot.slane %v238, %v242
    %245 = vmatprep.subr.mxu0 0.0
    %246 = vmatpush1.msra.mxu0 %v230
    %247 = vmatprep.subr.mxu0 0.0
    %248 = vmatpush1.msra.mxu0 %v231
    %249 = vmatprep.subr.mxu0 0.0
    %250 = vmatpush1.msra.mxu0 %v232
    %251 = vmatprep.subr.mxu0 0.0
    %252 = vmatpush1.msra.mxu0 %v233
    %253 = vmatprep.subr.mxu0 0.0
    %254 = vmatpush1.msra.mxu0 %v234
    %255 = vmatprep.subr.mxu0 0.0
    %256 = vmatpush1.msra.mxu0 %v235
    %257 = vmatprep.subr.mxu0 0.0
    %258 = vmatpush1.msra.mxu0 %v236
    %259 = vmatprep.subr.mxu0 0.0
    %260 = vmatpush1.msra.mxu0 %v237
    %261 = vmatprep.subr.mxu0 0.0
    %262 = vmatpush1.msra.mxu0 0.0
    %263 = vmatprep.subr.mxu0 0.0
    %264 = vmatpush1.msra.mxu0 0.0
    %265 = vmatprep.subr.mxu0 0.0
    %266 = vmatpush1.msra.mxu0 0.0
    %267 = vmatprep.subr.mxu0 0.0
    %268 = vmatpush1.msra.mxu0 0.0
    %269 = vmatprep.subr.mxu0 0.0
    %270 = vmatpush1.msra.mxu0 0.0
    %271 = vmatprep.subr.mxu0 0.0
    %272 = vmatpush1.msra.mxu0 0.0
    %273 = vmatprep.subr.mxu0 0.0
    %274 = vmatpush1.msra.mxu0 0.0
    %275 = vmatprep.subr.mxu0 0.0
    %276 = vmatpush1.msra.mxu0 0.0
    %277 = vmatprep.subr.mxu0 0.0
    %278 = vmatpush1.msra.mxu0 0.0
    %279 = vmatprep.subr.mxu0 0.0
    %280 = vmatpush1.msra.mxu0 0.0
    %281 = vmatprep.subr.mxu0 0.0
    %282 = vmatpush1.msra.mxu0 0.0
    %283 = vmatprep.subr.mxu0 0.0
    %284 = vmatpush1.msra.mxu0 0.0
    %285 = vmatprep.subr.mxu0 0.0
    %286 = vmatpush1.msra.mxu0 0.0
    %287 = vmatprep.subr.mxu0 0.0
    %288 = vmatpush1.msra.mxu0 0.0
    %289 = vmatprep.subr.mxu0 0.0
    %290 = vmatpush1.msra.mxu0 0.0
    %291 = vmatprep.subr.mxu0 0.0
    %292 = vmatpush1.msra.mxu0 0.0
    %293 = vmatprep.subr.mxu0 0.0
    %294 = vmatpush1.msra.mxu0 0.0
    %295 = vmatprep.subr.mxu0 0.0
    %296 = vmatpush1.msra.mxu0 0.0
    %297 = vmatprep.subr.mxu0 0.0
    %298 = vmatpush1.msra.mxu0 0.0
    %299 = vmatprep.subr.mxu0 0.0
    %300 = vmatpush1.msra.mxu0 0.0
    %301 = vmatprep.subr.mxu0 0.0
    %302 = vmatpush1.msra.mxu0 0.0
    %303 = vmatprep.subr.mxu0 0.0
    %304 = vmatpush1.msra.mxu0 0.0
    %305 = vmatprep.subr.mxu0 0.0
    %306 = vmatpush1.msra.mxu0 0.0
    %307 = vmatprep.subr.mxu0 0.0
    %308 = vmatpush1.msra.mxu0 0.0
    %309 = vmatprep.mubr.f32.mxu0 0.0
    %310 = vmatmul.mubr.f32.gmra.mrb[0].mxu0 %v150
    %v311 = vpop.f32.mrb[0].mxu0
    %v312 = vadd.f32 %v243, %v311
    %v313 = vpop.f32.mrb[0].mxu0
    %314 = vmatprep.mubr.f32.mxu0 0.0
    %315 = vmatmul.mubr.f32.gmra.mrb[0].mxu0 %v153
    %v316 = vpop.f32.mrb[0].mxu0
    %v317 = vadd.f32 %v243, %v316
    %v318 = vpop.f32.mrb[0].mxu0
    %319 = vdwg.mxu0
    %v320 = vld [vmem:[%s1] sm:$0xff]
    %v321 = vld [vmem:[%s1 + $0x8] sm:$0xff]
    %v323 = vsel %vm49, %v320, 0
    %v326 = vsel %vm49, %v321, 0
    %328 = vmatprep.subr.mxu0 0.0
    %329 = vmatpush1.msra.mxu0 %v38
    %330 = vmatprep.subr.mxu0 0.0
    %331 = vmatpush1.msra.mxu0 %v39
    %332 = vmatprep.subr.mxu0 0.0
    %333 = vmatpush1.msra.mxu0 %v40
    %334 = vmatprep.subr.mxu0 0.0
    %335 = vmatpush1.msra.mxu0 %v41
    %336 = vmatprep.subr.mxu0 0.0
    %337 = vmatpush1.msra.mxu0 0.0
    %338 = vmatprep.subr.mxu0 0.0
    %339 = vmatpush1.msra.mxu0 0.0
    %340 = vmatprep.subr.mxu0 0.0
    %341 = vmatpush1.msra.mxu0 0.0
    %342 = vmatprep.subr.mxu0 0.0
    %343 = vmatpush1.msra.mxu0 0.0
    %344 = vmatprep.subr.mxu0 0.0
    %345 = vmatpush1.msra.mxu0 0.0
    %346 = vmatprep.subr.mxu0 0.0
    %347 = vmatpush1.msra.mxu0 0.0
    %348 = vmatprep.subr.mxu0 0.0
    %349 = vmatpush1.msra.mxu0 0.0
    %350 = vmatprep.subr.mxu0 0.0
    %351 = vmatpush1.msra.mxu0 0.0
    %352 = vmatprep.subr.mxu0 0.0
    %353 = vmatpush1.msra.mxu0 0.0
    %354 = vmatprep.subr.mxu0 0.0
    %355 = vmatpush1.msra.mxu0 0.0
    %356 = vmatprep.subr.mxu0 0.0
    %357 = vmatpush1.msra.mxu0 0.0
    %358 = vmatprep.subr.mxu0 0.0
    %359 = vmatpush1.msra.mxu0 0.0
    %360 = vmatprep.subr.mxu0 0.0
    %361 = vmatpush1.msra.mxu0 0.0
    %362 = vmatprep.subr.mxu0 0.0
    %363 = vmatpush1.msra.mxu0 0.0
    %364 = vmatprep.subr.mxu0 0.0
    %365 = vmatpush1.msra.mxu0 0.0
    %366 = vmatprep.subr.mxu0 0.0
    %367 = vmatpush1.msra.mxu0 0.0
    %368 = vmatprep.subr.mxu0 0.0
    %369 = vmatpush1.msra.mxu0 0.0
    %370 = vmatprep.subr.mxu0 0.0
    %371 = vmatpush1.msra.mxu0 0.0
    %372 = vmatprep.subr.mxu0 0.0
    %373 = vmatpush1.msra.mxu0 0.0
    %374 = vmatprep.subr.mxu0 0.0
    %375 = vmatpush1.msra.mxu0 0.0
    %376 = vmatprep.subr.mxu0 0.0
    %377 = vmatpush1.msra.mxu0 0.0
    %378 = vmatprep.subr.mxu0 0.0
    %379 = vmatpush1.msra.mxu0 0.0
    %380 = vmatprep.subr.mxu0 0.0
    %381 = vmatpush1.msra.mxu0 0.0
    %382 = vmatprep.subr.mxu0 0.0
    %383 = vmatpush1.msra.mxu0 0.0
    %384 = vmatprep.subr.mxu0 0.0
    %385 = vmatpush1.msra.mxu0 0.0
    %386 = vmatprep.subr.mxu0 0.0
    %387 = vmatpush1.msra.mxu0 0.0
    %388 = vmatprep.subr.mxu0 0.0
    %389 = vmatpush1.msra.mxu0 0.0
    %390 = vmatprep.subr.mxu0 0.0
    %391 = vmatpush1.msra.mxu0 0.0
    %392 = vmatprep.mubr.f32.mxu0 0.0
    %393 = vmatmul.mubr.f32.gmra.mrb[0].mxu0 %v323
    %v394 = vpop.f32.mrb[0].mxu0
    %v395 = vadd.f32 %v47, %v394
    %v396 = vpop.f32.mrb[0].mxu0
    %397 = vmatprep.mubr.f32.mxu0 0.0
    %398 = vmatmul.mubr.f32.gmra.mrb[0].mxu0 %v326
    %v399 = vpop.f32.mrb[0].mxu0
    %v400 = vadd.f32 %v47, %v399
    %v401 = vpop.f32.mrb[0].mxu0
    %402 = vdwg.mxu0
    %v403 = vmax.f32 %v395, 0.0
    %v404 = vmax.f32 %v400, 0.0
    %v406 = vsel %vm148, %v403, 0
    %v409 = vsel %vm148, %v404, 0
    %411 = vmatprep.subr.mxu0 0.0
    %412 = vmatpush1.msra.mxu0 %v133
    %413 = vmatprep.subr.mxu0 0.0
    %414 = vmatpush1.msra.mxu0 %v134
    %415 = vmatprep.subr.mxu0 0.0
    %416 = vmatpush1.msra.mxu0 %v135
    %417 = vmatprep.subr.mxu0 0.0
    %418 = vmatpush1.msra.mxu0 %v136
    %419 = vmatprep.subr.mxu0 0.0
    %420 = vmatpush1.msra.mxu0 %v137
    %421 = vmatprep.subr.mxu0 0.0
    %422 = vmatpush1.msra.mxu0 %v138
    %423 = vmatprep.subr.mxu0 0.0
    %424 = vmatpush1.msra.mxu0 %v139
    %425 = vmatprep.subr.mxu0 0.0
    %426 = vmatpush1.msra.mxu0 %v140
    %427 = vmatprep.subr.mxu0 0.0
    %428 = vmatpush1.msra.mxu0 0.0
    %429 = vmatprep.subr.mxu0 0.0
    %430 = vmatpush1.msra.mxu0 0.0
    %431 = vmatprep.subr.mxu0 0.0
    %432 = vmatpush1.msra.mxu0 0.0
    %433 = vmatprep.subr.mxu0 0.0
    %434 = vmatpush1.msra.mxu0 0.0
    %435 = vmatprep.subr.mxu0 0.0
    %436 = vmatpush1.msra.mxu0 0.0
    %437 = vmatprep.subr.mxu0 0.0
    %438 = vmatpush1.msra.mxu0 0.0
    %439 = vmatprep.subr.mxu0 0.0
    %440 = vmatpush1.msra.mxu0 0.0
    %441 = vmatprep.subr.mxu0 0.0
    %442 = vmatpush1.msra.mxu0 0.0
    %443 = vmatprep.subr.mxu0 0.0
    %444 = vmatpush1.msra.mxu0 0.0
    %445 = vmatprep.subr.mxu0 0.0
    %446 = vmatpush1.msra.mxu0 0.0
    %447 = vmatprep.subr.mxu0 0.0
    %448 = vmatpush1.msra.mxu0 0.0
    %449 = vmatprep.subr.mxu0 0.0
    %450 = vmatpush1.msra.mxu0 0.0
    %451 = vmatprep.subr.mxu0 0.0
    %452 = vmatpush1.msra.mxu0 0.0
    %453 = vmatprep.subr.mxu0 0.0
    %454 = vmatpush1.msra.mxu0 0.0
    %455 = vmatprep.subr.mxu0 0.0
    %456 = vmatpush1.msra.mxu0 0.0
    %457 = vmatprep.subr.mxu0 0.0
    %458 = vmatpush1.msra.mxu0 0.0
    %459 = vmatprep.subr.mxu0 0.0
    %460 = vmatpush1.msra.mxu0 0.0
    %461 = vmatprep.subr.mxu0 0.0
    %462 = vmatpush1.msra.mxu0 0.0
    %463 = vmatprep.subr.mxu0 0.0
    %464 = vmatpush1.msra.mxu0 0.0
    %465 = vmatprep.subr.mxu0 0.0
    %466 = vmatpush1.msra.mxu0 0.0
    %467 = vmatprep.subr.mxu0 0.0
    %468 = vmatpush1.msra.mxu0 0.0
    %469 = vmatprep.subr.mxu0 0.0
    %470 = vmatpush1.msra.mxu0 0.0
    %471 = vmatprep.subr.mxu0 0.0
    %472 = vmatpush1.msra.mxu0 0.0
    %473 = vmatprep.subr.mxu0 0.0
    %474 = vmatpush1.msra.mxu0 0.0
    %475 = vmatprep.mubr.f32.mxu0 0.0
    %476 = vmatmul.mubr.f32.gmra.mrb[0].mxu0 %v406
    %v477 = vpop.f32.mrb[0].mxu0
    %v478 = vadd.f32 %v146, %v477
    %v479 = vpop.f32.mrb[0].mxu0
    %480 = vmatprep.mubr.f32.mxu0 0.0
    %481 = vmatmul.mubr.f32.gmra.mrb[0].mxu0 %v409
    %v482 = vpop.f32.mrb[0].mxu0
    %v483 = vadd.f32 %v146, %v482
    %v484 = vpop.f32.mrb[0].mxu0
    %485 = vdwg.mxu0
    %486 = vmatprep.subr.mxu0 0.0
    %487 = vmatpush1.msra.mxu0 %v230
    %488 = vmatprep.subr.mxu0 0.0
    %489 = vmatpush1.msra.mxu0 %v231
    %490 = vmatprep.subr.mxu0 0.0
    %491 = vmatpush1.msra.mxu0 %v232
    %492 = vmatprep.subr.mxu0 0.0
    %493 = vmatpush1.msra.mxu0 %v233
    %494 = vmatprep.subr.mxu0 0.0
    %495 = vmatpush1.msra.mxu0 %v234
    %496 = vmatprep.subr.mxu0 0.0
    %497 = vmatpush1.msra.mxu0 %v235
    %498 = vmatprep.subr.mxu0 0.0
    %499 = vmatpush1.msra.mxu0 %v236
    %500 = vmatprep.subr.mxu0 0.0
    %501 = vmatpush1.msra.mxu0 %v237
    %502 = vmatprep.subr.mxu0 0.0
    %503 = vmatpush1.msra.mxu0 0.0
    %504 = vmatprep.subr.mxu0 0.0
    %505 = vmatpush1.msra.mxu0 0.0
    %506 = vmatprep.subr.mxu0 0.0
    %507 = vmatpush1.msra.mxu0 0.0
    %508 = vmatprep.subr.mxu0 0.0
    %509 = vmatpush1.msra.mxu0 0.0
    %510 = vmatprep.subr.mxu0 0.0
    %511 = vmatpush1.msra.mxu0 0.0
    %512 = vmatprep.subr.mxu0 0.0
    %513 = vmatpush1.msra.mxu0 0.0
    %514 = vmatprep.subr.mxu0 0.0
    %515 = vmatpush1.msra.mxu0 0.0
    %516 = vmatprep.subr.mxu0 0.0
    %517 = vmatpush1.msra.mxu0 0.0
    %518 = vmatprep.subr.mxu0 0.0
    %519 = vmatpush1.msra.mxu0 0.0
    %520 = vmatprep.subr.mxu0 0.0
    %521 = vmatpush1.msra.mxu0 0.0
    %522 = vmatprep.subr.mxu0 0.0
    %523 = vmatpush1.msra.mxu0 0.0
    %524 = vmatprep.subr.mxu0 0.0
    %525 = vmatpush1.msra.mxu0 0.0
    %526 = vmatprep.subr.mxu0 0.0
    %527 = vmatpush1.msra.mxu0 0.0
    %528 = vmatprep.subr.mxu0 0.0
    %529 = vmatpush1.msra.mxu0 0.0
    %530 = vmatprep.subr.mxu0 0.0
    %531 = vmatpush1.msra.mxu0 0.0
    %532 = vmatprep.subr.mxu0 0.0
    %533 = vmatpush1.msra.mxu0 0.0
    %534 = vmatprep.subr.mxu0 0.0
    %535 = vmatpush1.msra.mxu0 0.0
    %536 = vmatprep.subr.mxu0 0.0
    %537 = vmatpush1.msra.mxu0 0.0
    %538 = vmatprep.subr.mxu0 0.0
    %539 = vmatpush1.msra.mxu0 0.0
    %540 = vmatprep.subr.mxu0 0.0
    %541 = vmatpush1.msra.mxu0 0.0
    %542 = vmatprep.subr.mxu0 0.0
    %543 = vmatpush1.msra.mxu0 0.0
    %544 = vmatprep.subr.mxu0 0.0
    %545 = vmatpush1.msra.mxu0 0.0
    %546 = vmatprep.subr.mxu0 0.0
    %547 = vmatpush1.msra.mxu0 0.0
    %548 = vmatprep.subr.mxu0 0.0
    %549 = vmatpush1.msra.mxu0 0.0
    %550 = vmatprep.mubr.f32.mxu0 0.0
    %551 = vmatmul.mubr.f32.gmra.mrb[0].mxu0 %v406
    %v552 = vpop.f32.mrb[0].mxu0
    %v553 = vadd.f32 %v243, %v552
    %v554 = vpop.f32.mrb[0].mxu0
    %555 = vmatprep.mubr.f32.mxu0 0.0
    %556 = vmatmul.mubr.f32.gmra.mrb[0].mxu0 %v409
    %v557 = vpop.f32.mrb[0].mxu0
    %v558 = vadd.f32 %v243, %v557
    %v559 = vpop.f32.mrb[0].mxu0
    %560 = vdwg.mxu0
    %v562 = vsel %vm49, %v222, 0
    %v565 = vsel %vm49, %v227, 0
    %v568 = vsel %vm49, %v478, 0
    %v571 = vsel %vm49, %v483, 0
    %573 = vmatprep.subr.mxu0 0.0
    %574 = vmatpush1.xpose.msra.mxu0 %v568
    %575 = vmatprep.subr.mxu0 0.0
    %576 = vmatpush1.xpose.msra.mxu0 %v571
    %577 = vmatprep.subr.mxu0 0.0
    %578 = vmatpush1.xpose.msra.mxu0 0.0
    %579 = vmatprep.subr.mxu0 0.0
    %580 = vmatpush1.xpose.msra.mxu0 0.0
    %581 = vmatprep.subr.mxu0 0.0
    %582 = vmatpush1.xpose.msra.mxu0 0.0
    %583 = vmatprep.subr.mxu0 0.0
    %584 = vmatpush1.xpose.msra.mxu0 0.0
    %585 = vmatprep.subr.mxu0 0.0
    %586 = vmatpush1.xpose.msra.mxu0 0.0
    %587 = vmatprep.subr.mxu0 0.0
    %588 = vmatpush1.xpose.msra.mxu0 0.0
    %589 = vmatprep.subr.mxu0 0.0
    %590 = vmatpush1.xpose.msra.mxu0 0.0
    %591 = vmatprep.subr.mxu0 0.0
    %592 = vmatpush1.xpose.msra.mxu0 0.0
    %593 = vmatprep.subr.mxu0 0.0
    %594 = vmatpush1.xpose.msra.mxu0 0.0
    %595 = vmatprep.subr.mxu0 0.0
    %596 = vmatpush1.xpose.msra.mxu0 0.0
    %597 = vmatprep.subr.mxu0 0.0
    %598 = vmatpush1.xpose.msra.mxu0 0.0
    %599 = vmatprep.subr.mxu0 0.0
    %600 = vmatpush1.xpose.msra.mxu0 0.0
    %601 = vmatprep.subr.mxu0 0.0
    %602 = vmatpush1.xpose.msra.mxu0 0.0
    %603 = vmatprep.subr.mxu0 0.0
    %604 = vmatpush1.xpose.msra.mxu0 0.0
    %605 = vmatprep.subr.mxu0 0.0
    %606 = vmatpush1.xpose.msra.mxu0 0.0
    %607 = vmatprep.subr.mxu0 0.0
    %608 = vmatpush1.xpose.msra.mxu0 0.0
    %609 = vmatprep.subr.mxu0 0.0
    %610 = vmatpush1.xpose.msra.mxu0 0.0
    %611 = vmatprep.subr.mxu0 0.0
    %612 = vmatpush1.xpose.msra.mxu0 0.0
    %613 = vmatprep.subr.mxu0 0.0
    %614 = vmatpush1.xpose.msra.mxu0 0.0
    %615 = vmatprep.subr.mxu0 0.0
    %616 = vmatpush1.xpose.msra.mxu0 0.0
    %617 = vmatprep.subr.mxu0 0.0
    %618 = vmatpush1.xpose.msra.mxu0 0.0
    %619 = vmatprep.subr.mxu0 0.0
    %620 = vmatpush1.xpose.msra.mxu0 0.0
    %621 = vmatprep.subr.mxu0 0.0
    %622 = vmatpush1.xpose.msra.mxu0 0.0
    %623 = vmatprep.subr.mxu0 0.0
    %624 = vmatpush1.xpose.msra.mxu0 0.0
    %625 = vmatprep.subr.mxu0 0.0
    %626 = vmatpush1.xpose.msra.mxu0 0.0
    %627 = vmatprep.subr.mxu0 0.0
    %628 = vmatpush1.xpose.msra.mxu0 0.0
    %629 = vmatprep.subr.mxu0 0.0
    %630 = vmatpush1.xpose.msra.mxu0 0.0
    %631 = vmatprep.subr.mxu0 0.0
    %632 = vmatpush1.xpose.msra.mxu0 0.0
    %633 = vmatprep.subr.mxu0 0.0
    %634 = vmatpush1.xpose.msra.mxu0 0.0
    %635 = vmatprep.subr.mxu0 0.0
    %636 = vmatpush1.xpose.msra.mxu0 0.0
    %637 = vmatprep.mubr.f32.mxu0 0.0
    %638 = vmatmul.mubr.f32.gmra.mrb[0].mxu0 %v562
    %v639 = vpop.f32.mrb[0].mxu0
    %v640 = vadd.f32 0.0, %v639
    %v641 = vpop.f32.mrb[0].mxu0
    %642 = vmatprep.mubr.f32.mxu0 0.0
    %643 = vmatmul.mubr.f32.gmra.mrb[0].mxu0 %v565
    %v644 = vpop.f32.mrb[0].mxu0
    %v645 = vadd.f32 0.0, %v644
    %v646 = vpop.f32.mrb[0].mxu0
    %647 = vdwg.mxu0
    %v649 = vsel %vm49, %v312, 0
    %v652 = vsel %vm49, %v317, 0
    %v655 = vsel %vm49, %v553, 0
    %v658 = vsel %vm49, %v558, 0
    %660 = vmatprep.subr.mxu0 0.0
    %661 = vmatpush1.xpose.msra.mxu0 %v655
    %662 = vmatprep.subr.mxu0 0.0
    %663 = vmatpush1.xpose.msra.mxu0 %v658
    %664 = vmatprep.subr.mxu0 0.0
    %665 = vmatpush1.xpose.msra.mxu0 0.0
    %666 = vmatprep.subr.mxu0 0.0
    %667 = vmatpush1.xpose.msra.mxu0 0.0
    %668 = vmatprep.subr.mxu0 0.0
    %669 = vmatpush1.xpose.msra.mxu0 0.0
    %670 = vmatprep.subr.mxu0 0.0
    %671 = vmatpush1.xpose.msra.mxu0 0.0
    %672 = vmatprep.subr.mxu0 0.0
    %673 = vmatpush1.xpose.msra.mxu0 0.0
    %674 = vmatprep.subr.mxu0 0.0
    %675 = vmatpush1.xpose.msra.mxu0 0.0
    %676 = vmatprep.subr.mxu0 0.0
    %677 = vmatpush1.xpose.msra.mxu0 0.0
    %678 = vmatprep.subr.mxu0 0.0
    %679 = vmatpush1.xpose.msra.mxu0 0.0
    %680 = vmatprep.subr.mxu0 0.0
    %681 = vmatpush1.xpose.msra.mxu0 0.0
    %682 = vmatprep.subr.mxu0 0.0
    %683 = vmatpush1.xpose.msra.mxu0 0.0
    %684 = vmatprep.subr.mxu0 0.0
    %685 = vmatpush1.xpose.msra.mxu0 0.0
    %686 = vmatprep.subr.mxu0 0.0
    %687 = vmatpush1.xpose.msra.mxu0 0.0
    %688 = vmatprep.subr.mxu0 0.0
    %689 = vmatpush1.xpose.msra.mxu0 0.0
    %690 = vmatprep.subr.mxu0 0.0
    %691 = vmatpush1.xpose.msra.mxu0 0.0
    %692 = vmatprep.subr.mxu0 0.0
    %693 = vmatpush1.xpose.msra.mxu0 0.0
    %694 = vmatprep.subr.mxu0 0.0
    %695 = vmatpush1.xpose.msra.mxu0 0.0
    %696 = vmatprep.subr.mxu0 0.0
    %697 = vmatpush1.xpose.msra.mxu0 0.0
    %698 = vmatprep.subr.mxu0 0.0
    %699 = vmatpush1.xpose.msra.mxu0 0.0
    %700 = vmatprep.subr.mxu0 0.0
    %701 = vmatpush1.xpose.msra.mxu0 0.0
    %702 = vmatprep.subr.mxu0 0.0
    %703 = vmatpush1.xpose.msra.mxu0 0.0
    %704 = vmatprep.subr.mxu0 0.0
    %705 = vmatpush1.xpose.msra.mxu0 0.0
    %706 = vmatprep.subr.mxu0 0.0
    %707 = vmatpush1.xpose.msra.mxu0 0.0
    %708 = vmatprep.subr.mxu0 0.0
    %709 = vmatpush1.xpose.msra.mxu0 0.0
    %710 = vmatprep.subr.mxu0 0.0
    %711 = vmatpush1.xpose.msra.mxu0 0.0
    %712 = vmatprep.subr.mxu0 0.0
    %713 = vmatpush1.xpose.msra.mxu0 0.0
    %714 = vmatprep.subr.mxu0 0.0
    %715 = vmatpush1.xpose.msra.mxu0 0.0
    %716 = vmatprep.subr.mxu0 0.0
    %717 = vmatpush1.xpose.msra.mxu0 0.0
    %718 = vmatprep.subr.mxu0 0.0
    %719 = vmatpush1.xpose.msra.mxu0 0.0
    %720 = vmatprep.subr.mxu0 0.0
    %721 = vmatpush1.xpose.msra.mxu0 0.0
    %722 = vmatprep.subr.mxu0 0.0
    %723 = vmatpush1.xpose.msra.mxu0 0.0
    %724 = vmatprep.mubr.f32.mxu0 0.0
    %725 = vmatmul.mubr.f32.gmra.mrb[0].mxu0 %v649
    %v726 = vpop.f32.mrb[0].mxu0
    %v727 = vadd.f32 0.0, %v726
    %v728 = vpop.f32.mrb[0].mxu0
    %729 = vmatprep.mubr.f32.mxu0 0.0
    %730 = vmatmul.mubr.f32.gmra.mrb[0].mxu0 %v652
    %v731 = vpop.f32.mrb[0].mxu0
    %v732 = vadd.f32 0.0, %v731
    %v733 = vpop.f32.mrb[0].mxu0
    %734 = vdwg.mxu0
    %v735 = vsub.f32 0.0, %v640
    %v736 = vsub.f32 0.0, %v645
    %v737 = vmul.f32 %v735, 1.442695
    %v738 = vpow.pop %v737
    %v739 = vmul.f32 %v736, 1.442695
    %v740 = vpow.pop %v739
    %v741 = vadd.f32 %v738, 1.0
    %v742 = vadd.f32 %v740, 1.0
    %v743 = vrcp.pop %v741
    %v744 = vmul.f32 1.0, %v743
    %v745 = vrcp.pop %v742
    %v746 = vmul.f32 1.0, %v745
    %vm747 = vcmask 130048
    %748 = vst.msk [vmem:[#allocation2] sm:$0xff] %vm747, %v744
    %749 = vst.msk [vmem:[#allocation2 + $0x8] sm:$0xff] %vm747, %v746
    %v750 = vld [vmem:[%s8] sm:$0xff]
    %v751 = vld [vmem:[%s8 + $0x8] sm:$0xff]
    %v752 = vmul.f32 %v727, %v750
    %v753 = vmul.f32 %v732, %v751
    %v754 = vsub.f32 0.0, %v752
    %v755 = vsub.f32 0.0, %v753
    %v756 = vmul.f32 %v754, 1.442695
    %v757 = vpow.pop %v756
    %v758 = vmul.f32 %v755, 1.442695
    %v759 = vpow.pop %v758
    %v760 = vadd.f32 %v757, 1.0
    %v761 = vadd.f32 %v759, 1.0
    %v762 = vrcp.pop %v760
    %v763 = vmul.f32 1.0, %v762
    %v764 = vrcp.pop %v761
    %v765 = vmul.f32 1.0, %v764
    %766 = vst.msk [vmem:[#allocation4] sm:$0xff] %vm747, %v763
    %767 = vst.msk [vmem:[#allocation4 + $0x8] sm:$0xff] %vm747, %v765
    // Predicated region
    $region38: #{tpu_custom_call.1} parent=1 // pred_check
      _
    $region39: #{tpu_custom_call.1} parent=1 // pred_check_branch
      %769 = sbr.rel (0) target = $region41
    $region40: #{tpu_custom_call.1} parent=1 // pred_region
      %s771 = ssub.s32 256, 256
      %772 = vsyncadd [#allocation3], %s771
      %s773 = sshll.u32 [#allocation2], 4
      %s774 = int_to_ptr.vmem [resolvable:$true] %s773
      %779 = dma.vmem_to_hbm [thread:$0]  %s774, 256, %s9, [#allocation3], 128, 128, 8
    $region41: #{tpu_custom_call.1} parent=1 // pred_fallthru
      _
    // Predicated region
    $region42: #{tpu_custom_call.1} parent=1 // pred_check
      _
    $region43: #{tpu_custom_call.1} parent=1 // pred_check_branch
      %781 = sbr.rel (0) target = $region45
    $region44: #{tpu_custom_call.1} parent=1 // pred_region
      %s783 = ssub.s32 256, 256
      %784 = vsyncadd [#allocation5], %s783
      %s785 = sshll.u32 [#allocation4], 4
      %s786 = int_to_ptr.vmem [resolvable:$true] %s785
      %791 = dma.vmem_to_hbm [thread:$0]  %s786, 256, %s10, [#allocation5], 128, 128, 8
    $region45: #{tpu_custom_call.1} parent=1 // pred_fallthru
      _
    // Predicated region
    $region46: #{tpu_custom_call.1} parent=1 // pred_check
      _
    $region47: #{tpu_custom_call.1} parent=1 // pred_check_branch
      %793 = sbr.rel (0) target = $region49
    $region48: #{tpu_custom_call.1} parent=1 // pred_region
      %794 = dma.done [#allocation3], 256
    $region49: #{tpu_custom_call.1} parent=1 // pred_fallthru
      _
    // Predicated region
    $region50: #{tpu_custom_call.1} parent=1 // pred_check
      _
    $region51: #{tpu_custom_call.1} parent=1 // pred_check_branch
      %796 = sbr.rel (0) target = $region53
    $region52: #{tpu_custom_call.1} parent=1 // pred_region
      %797 = dma.done [#allocation5], 256
    $region53: #{tpu_custom_call.1} parent=1 // pred_fallthru
      _
    %798 = vsyncpa [#allocation3], 1
    %799 = vsyncpa [#allocation5], 1

</llo_original>
